<compile_context>
chip_gen: v7x
topology: tpu7x:2x2x1
jax: 0.10.0
libtpu: 0.0.40
codegen_flags: <defaults>
</compile_context>

<pallas_src>
import functools

import jax
import jax.numpy as jnp
from jax.experimental import pallas as pl
from jax.experimental.pallas import tpu as pltpu


_UNROLL_MAX = 8  # above this, use lax.fori_loop instead of a static unroll


def _round_up(x, m):
    return (x + m - 1) // m * m


def _ram_kernel(num_encoder, hidden, unroll,
                x_ref, wh_ref, bh_ref, wi_ref, bi_ref, wm_ref, bm_ref,
                out_ref, *scratch):
    """One batch tile of the forward pass; everything VMEM-resident."""
    wh = wh_ref[...]

    # Loop-invariant term Wi @ x + bi + bh (f32 accumulation; both bias
    # broadcasts hoisted out of the recurrence).
    xib = (jnp.dot(x_ref[...], wi_ref[...], preferred_element_type=jnp.float32)
           + bi_ref[...] + bh_ref[...]).astype(jnp.float32)

    # e = 1: h_0 == 0, so Wh @ h_0 is identically zero -> elide that matmul.
    h = jnp.tanh(xib)

    if unroll:
        # Small num_encoder: static unroll, write each h_e into a VMEM
        # scratch at a static column offset, then ONE MLP matmul (K = E*H).
        hcat_ref = scratch[0]
        hcat_ref[:, 0:hidden] = h
        for e in range(1, num_encoder):
            h = jnp.tanh(
                jnp.dot(h.astype(wh.dtype), wh,
                        preferred_element_type=jnp.float32) + xib)
            hcat_ref[:, e * hidden:(e + 1) * hidden] = h
        mlp = jnp.dot(hcat_ref[...].astype(wm_ref.dtype), wm_ref[...],
                      preferred_element_type=jnp.float32)
    else:
        # Large num_encoder: fori_loop keeps only (h, acc) live. The MLP is
        # accumulated per step from a sublane-aligned row slice of Wm, using
        #   concat_e(h_e) @ Wm == sum_e h_e @ Wm[e*H:(e+1)*H].
        acc0 = jnp.dot(h.astype(wm_ref.dtype), wm_ref[0:hidden, :],
                       preferred_element_type=jnp.float32)

        def body(e, carry):
            h, acc = carry
            h = jnp.tanh(
                jnp.dot(h.astype(wh.dtype), wh,
                        preferred_element_type=jnp.float32) + xib)
            row = pl.multiple_of(e * hidden, hidden)
            w_e = wm_ref[pl.ds(row, hidden), :]
            acc = acc + jnp.dot(h.astype(w_e.dtype), w_e,
                                preferred_element_type=jnp.float32)
            return h, acc

        _, mlp = jax.lax.fori_loop(1, num_encoder, body, (h, acc0))

    out_ref[...] = (mlp + bm_ref[...]).astype(out_ref.dtype)


def prepare_params(params, dtype=jnp.bfloat16):
    """Cast parameters ONCE to the MXU operand dtype (do this outside the
    per-call path so every forward does not re-read/re-write weights in HBM)."""
    return {k: v.astype(dtype) for k, v in params.items()}


def recurrent_autoencoder(inputs, params, *, num_encoder, block_batch=1024):
    """inputs: (batch, input_size) -> (batch, hidden_size) float32.

    `params` should already be in the desired operand dtype (see
    prepare_params); accumulation and tanh are always float32 inside.
    """
    assert num_encoder >= 1, "num_encoder must be >= 1"
    batch, input_size = inputs.shape
    hidden = params["wh"].shape[0]

    op_dtype = params["wi"].dtype
    op_bytes = jnp.dtype(op_dtype).itemsize
    x = inputs if inputs.dtype == op_dtype else inputs.astype(op_dtype)

    # Batch tile: multiple of 8 (f32 sublane), capped by block_batch, with no
    # wrapper-side padding (ragged last tile is masked by Pallas).
    tb = min(_round_up(block_batch, 8), _round_up(batch, 8))
    if batch >= 16:
        # Guarantee >= 2 grid steps so a v7x megacore uses both TensorCores.
        tb = min(tb, _round_up(-(-batch // 2), 8))
    if tb > batch:
        tb = batch  # full-extent block; allowed even when batch % 8 != 0
    grid = (pl.cdiv(batch, tb),)

    unroll = num_encoder <= _UNROLL_MAX
    scratch_shapes = (
        [pltpu.VMEM((tb, num_encoder * hidden), jnp.float32)] if unroll else [])

    # Explicit VMEM budget (v5e scoped default is only 16 MiB; v7x has 64 MiB
    # physical). Floor at 32 MiB, cap at 48 MiB to leave headroom everywhere.
    w_bytes = (hidden * hidden + input_size * hidden
               + num_encoder * hidden * hidden + 3 * hidden) * op_bytes
    io_bytes = 2 * tb * input_size * op_bytes + 2 * tb * hidden * 4
    sc_bytes = tb * num_encoder * hidden * 4 if unroll else 0

    def call(single_buffer_weights):
        wbuf = 1 if single_buffer_weights else 2
        est = wbuf * w_bytes + io_bytes + sc_bytes
        vmem_limit = int(min(max(2 * est + (4 << 20), 32 << 20), 48 << 20))

        bcast = lambda i: (0, 0)  # weights/biases: same block every grid step

        def wspec(shape):
            if single_buffer_weights:
                # Constant block index -> single-buffer to save VMEM.
                return pl.BlockSpec(shape, bcast, pipeline_mode=pl.Buffered(1))
            return pl.BlockSpec(shape, bcast)

        kern = functools.partial(_ram_kernel, num_encoder, hidden, unroll)
        return pl.pallas_call(
            kern,
            out_shape=jax.ShapeDtypeStruct((batch, hidden), jnp.float32),
            grid=grid,
            in_specs=[
                pl.BlockSpec((tb, input_size), lambda i: (i, 0)),       # x
                wspec((hidden, hidden)),                                # Wh
                wspec((1, hidden)),                                     # bh
                wspec((input_size, hidden)),                            # Wi
                wspec((1, hidden)),                                     # bi
                wspec((hidden * num_encoder, hidden)),                  # Wm
                wspec((1, hidden)),                                     # bm
            ],
            out_specs=pl.BlockSpec((tb, hidden), lambda i: (i, 0)),
            scratch_shapes=scratch_shapes,
            compiler_params=pltpu.CompilerParams(
                dimension_semantics=("parallel",),
                vmem_limit_bytes=vmem_limit),
        )(x, params["wh"], params["bh"], params["wi"], params["bi"],
          params["wm"], params["bm"])

    try:
        return call(single_buffer_weights=True)
    except Exception:
        # pipeline_mode=pl.Buffered(1) not supported by this jax build: fall
        # back to default double-buffered weight blocks (identical numerics,
        # just a bit more VMEM).
        return call(single_buffer_weights=False)


def init_params(key, num_encoder, input_size, hidden_size):
    """Deterministic nn.Linear-style init (U(-1/sqrt(fan_in), 1/sqrt(fan_in)))."""
    ks = jax.random.split(key, 6)

    def linear(kw, kb, fan_in, fan_out):
        bound = 1.0 / float(fan_in) ** 0.5
        w = jax.random.uniform(kw, (fan_in, fan_out), jnp.float32, -bound, bound)
        b = jax.random.uniform(kb, (1, fan_out), jnp.float32, -bound, bound)
        return w, b

    wh, bh = linear(ks[0], ks[1], hidden_size, hidden_size)                 # self.Wh
    wi, bi = linear(ks[2], ks[3], input_size, hidden_size)                  # self.Wi
    wm, bm = linear(ks[4], ks[5], hidden_size * num_encoder, hidden_size)   # self.MLP
    return dict(wh=wh, bh=bh, wi=wi, bi=bi, wm=wm, bm=bm)


def reference_forward(inputs, params, *, num_encoder):
    """Pure-JAX reference of the same math, for correctness checking."""
    xi = inputs @ params["wi"] + params["bi"]
    h = jnp.zeros_like(xi)
    hs = []
    for _ in range(num_encoder):
        h = jnp.tanh(h @ params["wh"] + params["bh"] + xi)
        hs.append(h)
    concat = jnp.concatenate(hs, axis=-1)
    return concat @ params["wm"] + params["bm"]


if __name__ == "__main__":
    num_encoder = 3
    input_size = 16
    hidden_size = 32
    batch = 8

    key = jax.random.PRNGKey(0)
    k_param, k_x = jax.random.split(key)

    params = init_params(k_param, num_encoder, input_size, hidden_size)
    x = jax.random.normal(k_x, (batch, input_size), jnp.float32)

    ref = reference_forward(x, params, num_encoder=num_encoder)

    # f32 operand path — exact match vs. reference.
    out_f32 = recurrent_autoencoder(
        x, prepare_params(params, jnp.float32), num_encoder=num_encoder)
    out_f32 = jax.block_until_ready(out_f32)
    assert out_f32.shape == (batch, hidden_size)
    assert jnp.allclose(out_f32, ref, atol=1e-5, rtol=1e-5), "f32 mismatch"

    # Default bf16 operand path (f32 accumulation/tanh inside) — looser tol.
    out_bf16 = recurrent_autoencoder(
        x, prepare_params(params), num_encoder=num_encoder)
    out_bf16 = jax.block_until_ready(out_bf16)
    assert jnp.allclose(out_bf16, ref, atol=5e-2, rtol=5e-2), "bf16 mismatch"

    print("KERNEL_OK")
</pallas_src>

<mosaic_0001>
module attributes {stable_mosaic.version = 11 : i64} {
  func.func @_ram_kernel(%arg0: i32, %arg1: memref<8x16xf32, #tpu.memory_space<vmem>>, %arg2: memref<32x32xf32, #tpu.memory_space<vmem>>, %arg3: memref<1x32xf32, #tpu.memory_space<vmem>>, %arg4: memref<16x32xf32, #tpu.memory_space<vmem>>, %arg5: memref<1x32xf32, #tpu.memory_space<vmem>>, %arg6: memref<96x32xf32, #tpu.memory_space<vmem>>, %arg7: memref<1x32xf32, #tpu.memory_space<vmem>>, %arg8: memref<8x32xf32, #tpu.memory_space<vmem>>, %arg9: memref<8x96xf32, #tpu.memory_space<vmem>>) attributes {dimension_semantics = [#tpu.dimension_semantics<parallel>], iteration_bounds = array<i64: 1>, scalar_prefetch = 0 : i64, scratch_operands = 1 : i64, tpu.core_type = #tpu.core_type<tc>, window_params = [{transform_indices = @transform_0, window_bounds = array<i64: 8, 16>}, {pipeline_mode = #tpu.pipeline_mode<synchronous>, transform_indices = @transform_1, window_bounds = array<i64: 32, 32>}, {pipeline_mode = #tpu.pipeline_mode<synchronous>, transform_indices = @transform_2, window_bounds = array<i64: 1, 32>}, {pipeline_mode = #tpu.pipeline_mode<synchronous>, transform_indices = @transform_3, window_bounds = array<i64: 16, 32>}, {pipeline_mode = #tpu.pipeline_mode<synchronous>, transform_indices = @transform_4, window_bounds = array<i64: 1, 32>}, {pipeline_mode = #tpu.pipeline_mode<synchronous>, transform_indices = @transform_5, window_bounds = array<i64: 96, 32>}, {pipeline_mode = #tpu.pipeline_mode<synchronous>, transform_indices = @transform_6, window_bounds = array<i64: 1, 32>}, {transform_indices = @transform_7, window_bounds = array<i64: 8, 32>}]} {
    %c0 = arith.constant 0 : index
    %c0_0 = arith.constant 0 : index
    %0 = vector.load %arg2[%c0, %c0_0] : memref<32x32xf32, #tpu.memory_space<vmem>>, vector<32x32xf32>
    %c0_1 = arith.constant 0 : index
    %c0_2 = arith.constant 0 : index
    %1 = vector.load %arg1[%c0_1, %c0_2] : memref<8x16xf32, #tpu.memory_space<vmem>>, vector<8x16xf32>
    %c0_3 = arith.constant 0 : index
    %c0_4 = arith.constant 0 : index
    %2 = vector.load %arg4[%c0_3, %c0_4] : memref<16x32xf32, #tpu.memory_space<vmem>>, vector<16x32xf32>
    %cst = arith.constant dense<0.000000e+00> : vector<8x32xf32>
    %3 = tpu.matmul %1, %2, %cst {dimension_numbers = #tpu.dot_dimension_numbers<[1], [0], [0], [1], [0, 0, 1, 1], [], []>} : vector<8x16xf32>, vector<16x32xf32>, vector<8x32xf32> -> vector<8x32xf32>
    %c0_5 = arith.constant 0 : index
    %c0_6 = arith.constant 0 : index
    %4 = vector.load %arg5[%c0_5, %c0_6] : memref<1x32xf32, #tpu.memory_space<vmem>>, vector<1x32xf32>
    %5 = vector.broadcast %4 : vector<1x32xf32> to vector<8x32xf32>
    %6 = arith.addf %3, %5 : vector<8x32xf32>
    %c0_7 = arith.constant 0 : index
    %c0_8 = arith.constant 0 : index
    %7 = vector.load %arg3[%c0_7, %c0_8] : memref<1x32xf32, #tpu.memory_space<vmem>>, vector<1x32xf32>
    %8 = vector.broadcast %7 : vector<1x32xf32> to vector<8x32xf32>
    %9 = arith.addf %6, %8 : vector<8x32xf32>
    %10 = math.tanh %9 : vector<8x32xf32>
    %c0_9 = arith.constant 0 : index
    %c0_10 = arith.constant 0 : index
    %11 = vector.load %arg9[%c0_9, %c0_10] : memref<8x96xf32, #tpu.memory_space<vmem>>, vector<8x32xf32>
    tpu.vector_store %arg9[%c0_9, %c0_10], %10 {strides = array<i32>} : memref<8x96xf32, #tpu.memory_space<vmem>>, vector<8x32xf32>,
    %cst_11 = arith.constant dense<0.000000e+00> : vector<8x32xf32>
    %12 = tpu.matmul %10, %0, %cst_11 {dimension_numbers = #tpu.dot_dimension_numbers<[1], [0], [0], [1], [0, 0, 1, 1], [], []>} : vector<8x32xf32>, vector<32x32xf32>, vector<8x32xf32> -> vector<8x32xf32>
    %13 = arith.addf %12, %9 : vector<8x32xf32>
    %14 = math.tanh %13 : vector<8x32xf32>
    %c0_12 = arith.constant 0 : index
    %c32 = arith.constant 32 : index
    %15 = vector.load %arg9[%c0_12, %c32] : memref<8x96xf32, #tpu.memory_space<vmem>>, vector<8x32xf32>
    tpu.vector_store %arg9[%c0_12, %c32], %14 {strides = array<i32>} : memref<8x96xf32, #tpu.memory_space<vmem>>, vector<8x32xf32>,
    %cst_13 = arith.constant dense<0.000000e+00> : vector<8x32xf32>
    %16 = tpu.matmul %14, %0, %cst_13 {dimension_numbers = #tpu.dot_dimension_numbers<[1], [0], [0], [1], [0, 0, 1, 1], [], []>} : vector<8x32xf32>, vector<32x32xf32>, vector<8x32xf32> -> vector<8x32xf32>
    %17 = arith.addf %16, %9 : vector<8x32xf32>
    %18 = math.tanh %17 : vector<8x32xf32>
    %c0_14 = arith.constant 0 : index
    %c64 = arith.constant 64 : index
    %19 = vector.load %arg9[%c0_14, %c64] : memref<8x96xf32, #tpu.memory_space<vmem>>, vector<8x32xf32>
    tpu.vector_store %arg9[%c0_14, %c64], %18 {strides = array<i32>} : memref<8x96xf32, #tpu.memory_space<vmem>>, vector<8x32xf32>,
    %c0_15 = arith.constant 0 : index
    %c0_16 = arith.constant 0 : index
    %20 = vector.load %arg9[%c0_15, %c0_16] : memref<8x96xf32, #tpu.memory_space<vmem>>, vector<8x96xf32>
    %c0_17 = arith.constant 0 : index
    %c0_18 = arith.constant 0 : index
    %21 = vector.load %arg6[%c0_17, %c0_18] : memref<96x32xf32, #tpu.memory_space<vmem>>, vector<96x32xf32>
    %cst_19 = arith.constant dense<0.000000e+00> : vector<8x32xf32>
    %22 = tpu.matmul %20, %21, %cst_19 {dimension_numbers = #tpu.dot_dimension_numbers<[1], [0], [0], [1], [0, 0, 1, 1], [], []>} : vector<8x96xf32>, vector<96x32xf32>, vector<8x32xf32> -> vector<8x32xf32>
    %c0_20 = arith.constant 0 : index
    %c0_21 = arith.constant 0 : index
    %23 = vector.load %arg7[%c0_20, %c0_21] : memref<1x32xf32, #tpu.memory_space<vmem>>, vector<1x32xf32>
    %24 = vector.broadcast %23 : vector<1x32xf32> to vector<8x32xf32>
    %25 = arith.addf %22, %24 : vector<8x32xf32>
    %c0_22 = arith.constant 0 : index
    %c0_23 = arith.constant 0 : index
    %26 = vector.load %arg8[%c0_22, %c0_23] : memref<8x32xf32, #tpu.memory_space<vmem>>, vector<8x32xf32>
    tpu.vector_store %arg8[%c0_22, %c0_23], %25 {strides = array<i32>} : memref<8x32xf32, #tpu.memory_space<vmem>>, vector<8x32xf32>,
    return
  }
  func.func @transform_0(%arg0: i32) -> (i32, i32) {
    %c0_i32 = arith.constant 0 : i32
    %c0_i32_0 = arith.constant 0 : i32
    return %arg0, %c0_i32 : i32, i32
  }
  func.func @transform_1(%arg0: i32) -> (i32, i32) {
    %c0_i32 = arith.constant 0 : i32
    %c0_i32_0 = arith.constant 0 : i32
    %c0_i32_1 = arith.constant 0 : i32
    return %c0_i32, %c0_i32_0 : i32, i32
  }
  func.func @transform_2(%arg0: i32) -> (i32, i32) {
    %c0_i32 = arith.constant 0 : i32
    %c0_i32_0 = arith.constant 0 : i32
    %c0_i32_1 = arith.constant 0 : i32
    return %c0_i32, %c0_i32_0 : i32, i32
  }
  func.func @transform_3(%arg0: i32) -> (i32, i32) {
    %c0_i32 = arith.constant 0 : i32
    %c0_i32_0 = arith.constant 0 : i32
    %c0_i32_1 = arith.constant 0 : i32
    return %c0_i32, %c0_i32_0 : i32, i32
  }
  func.func @transform_4(%arg0: i32) -> (i32, i32) {
    %c0_i32 = arith.constant 0 : i32
    %c0_i32_0 = arith.constant 0 : i32
    %c0_i32_1 = arith.constant 0 : i32
    return %c0_i32, %c0_i32_0 : i32, i32
  }
  func.func @transform_5(%arg0: i32) -> (i32, i32) {
    %c0_i32 = arith.constant 0 : i32
    %c0_i32_0 = arith.constant 0 : i32
    %c0_i32_1 = arith.constant 0 : i32
    return %c0_i32, %c0_i32_0 : i32, i32
  }
  func.func @transform_6(%arg0: i32) -> (i32, i32) {
    %c0_i32 = arith.constant 0 : i32
    %c0_i32_0 = arith.constant 0 : i32
    %c0_i32_1 = arith.constant 0 : i32
    return %c0_i32, %c0_i32_0 : i32, i32
  }
  func.func @transform_7(%arg0: i32) -> (i32, i32) {
    %c0_i32 = arith.constant 0 : i32
    %c0_i32_0 = arith.constant 0 : i32
    return %arg0, %c0_i32 : i32, i32
  }
}

module attributes {stable_mosaic.version = 11 : i64} {
  func.func @_ram_kernel(%arg0: i32, %arg1: memref<8x16xf32, #tpu.memory_space<vmem>>, %arg2: memref<32x32xf32, #tpu.memory_space<vmem>>, %arg3: memref<1x32xf32, #tpu.memory_space<vmem>>, %arg4: memref<16x32xf32, #tpu.memory_space<vmem>>, %arg5: memref<1x32xf32, #tpu.memory_space<vmem>>, %arg6: memref<96x32xf32, #tpu.memory_space<vmem>>, %arg7: memref<1x32xf32, #tpu.memory_space<vmem>>, %arg8: memref<8x32xf32, #tpu.memory_space<vmem>>, %arg9: memref<8x96xf32, #tpu.memory_space<vmem>>) attributes {dimension_semantics = [#tpu.dimension_semantics<parallel>], iteration_bounds = array<i64: 1>, scalar_prefetch = 0 : i64, scratch_operands = 1 : i64, tpu.core_type = #tpu.core_type<tc>, window_params = [{transform_indices = @transform_0, window_bounds = array<i64: 8, 16>}, {pipeline_mode = #tpu.pipeline_mode<synchronous>, transform_indices = @transform_1, window_bounds = array<i64: 32, 32>}, {pipeline_mode = #tpu.pipeline_mode<synchronous>, transform_indices = @transform_2, window_bounds = array<i64: 1, 32>}, {pipeline_mode = #tpu.pipeline_mode<synchronous>, transform_indices = @transform_3, window_bounds = array<i64: 16, 32>}, {pipeline_mode = #tpu.pipeline_mode<synchronous>, transform_indices = @transform_4, window_bounds = array<i64: 1, 32>}, {pipeline_mode = #tpu.pipeline_mode<synchronous>, transform_indices = @transform_5, window_bounds = array<i64: 96, 32>}, {pipeline_mode = #tpu.pipeline_mode<synchronous>, transform_indices = @transform_6, window_bounds = array<i64: 1, 32>}, {transform_indices = @transform_7, window_bounds = array<i64: 8, 32>}]} {
    %c0 = arith.constant 0 : index
    %c0_0 = arith.constant 0 : index
    %0 = vector.load %arg2[%c0, %c0_0] : memref<32x32xf32, #tpu.memory_space<vmem>>, vector<32x32xf32>
    %c0_1 = arith.constant 0 : index
    %c0_2 = arith.constant 0 : index
    %1 = vector.load %arg1[%c0_1, %c0_2] : memref<8x16xf32, #tpu.memory_space<vmem>>, vector<8x16xf32>
    %c0_3 = arith.constant 0 : index
    %c0_4 = arith.constant 0 : index
    %2 = vector.load %arg4[%c0_3, %c0_4] : memref<16x32xf32, #tpu.memory_space<vmem>>, vector<16x32xf32>
    %cst = arith.constant dense<0.000000e+00> : vector<8x32xf32>
    %3 = tpu.matmul %1, %2, %cst {dimension_numbers = #tpu.dot_dimension_numbers<[1], [0], [0], [1], [0, 0, 1, 1], [], []>} : vector<8x16xf32>, vector<16x32xf32>, vector<8x32xf32> -> vector<8x32xf32>
    %c0_5 = arith.constant 0 : index
    %c0_6 = arith.constant 0 : index
    %4 = vector.load %arg5[%c0_5, %c0_6] : memref<1x32xf32, #tpu.memory_space<vmem>>, vector<1x32xf32>
    %5 = vector.broadcast %4 : vector<1x32xf32> to vector<8x32xf32>
    %6 = arith.addf %3, %5 : vector<8x32xf32>
    %c0_7 = arith.constant 0 : index
    %c0_8 = arith.constant 0 : index
    %7 = vector.load %arg3[%c0_7, %c0_8] : memref<1x32xf32, #tpu.memory_space<vmem>>, vector<1x32xf32>
    %8 = vector.broadcast %7 : vector<1x32xf32> to vector<8x32xf32>
    %9 = arith.addf %6, %8 : vector<8x32xf32>
    %10 = math.tanh %9 : vector<8x32xf32>
    %c0_9 = arith.constant 0 : index
    %c0_10 = arith.constant 0 : index
    %11 = vector.load %arg9[%c0_9, %c0_10] : memref<8x96xf32, #tpu.memory_space<vmem>>, vector<8x32xf32>
    tpu.vector_store %arg9[%c0_9, %c0_10], %10 {strides = array<i32>} : memref<8x96xf32, #tpu.memory_space<vmem>>, vector<8x32xf32>,
    %cst_11 = arith.constant dense<0.000000e+00> : vector<8x32xf32>
    %12 = tpu.matmul %10, %0, %cst_11 {dimension_numbers = #tpu.dot_dimension_numbers<[1], [0], [0], [1], [0, 0, 1, 1], [], []>} : vector<8x32xf32>, vector<32x32xf32>, vector<8x32xf32> -> vector<8x32xf32>
    %13 = arith.addf %12, %9 : vector<8x32xf32>
    %14 = math.tanh %13 : vector<8x32xf32>
    %c0_12 = arith.constant 0 : index
    %c32 = arith.constant 32 : index
    %15 = vector.load %arg9[%c0_12, %c32] : memref<8x96xf32, #tpu.memory_space<vmem>>, vector<8x32xf32>
    tpu.vector_store %arg9[%c0_12, %c32], %14 {strides = array<i32>} : memref<8x96xf32, #tpu.memory_space<vmem>>, vector<8x32xf32>,
    %cst_13 = arith.constant dense<0.000000e+00> : vector<8x32xf32>
    %16 = tpu.matmul %14, %0, %cst_13 {dimension_numbers = #tpu.dot_dimension_numbers<[1], [0], [0], [1], [0, 0, 1, 1], [], []>} : vector<8x32xf32>, vector<32x32xf32>, vector<8x32xf32> -> vector<8x32xf32>
    %17 = arith.addf %16, %9 : vector<8x32xf32>
    %18 = math.tanh %17 : vector<8x32xf32>
    %c0_14 = arith.constant 0 : index
    %c64 = arith.constant 64 : index
    %19 = vector.load %arg9[%c0_14, %c64] : memref<8x96xf32, #tpu.memory_space<vmem>>, vector<8x32xf32>
    tpu.vector_store %arg9[%c0_14, %c64], %18 {strides = array<i32>} : memref<8x96xf32, #tpu.memory_space<vmem>>, vector<8x32xf32>,
    %c0_15 = arith.constant 0 : index
    %c0_16 = arith.constant 0 : index
    %20 = vector.load %arg9[%c0_15, %c0_16] : memref<8x96xf32, #tpu.memory_space<vmem>>, vector<8x96xf32>
    %c0_17 = arith.constant 0 : index
    %c0_18 = arith.constant 0 : index
    %21 = vector.load %arg6[%c0_17, %c0_18] : memref<96x32xf32, #tpu.memory_space<vmem>>, vector<96x32xf32>
    %cst_19 = arith.constant dense<0.000000e+00> : vector<8x32xf32>
    %22 = tpu.matmul %20, %21, %cst_19 {dimension_numbers = #tpu.dot_dimension_numbers<[1], [0], [0], [1], [0, 0, 1, 1], [], []>} : vector<8x96xf32>, vector<96x32xf32>, vector<8x32xf32> -> vector<8x32xf32>
    %c0_20 = arith.constant 0 : index
    %c0_21 = arith.constant 0 : index
    %23 = vector.load %arg7[%c0_20, %c0_21] : memref<1x32xf32, #tpu.memory_space<vmem>>, vector<1x32xf32>
    %24 = vector.broadcast %23 : vector<1x32xf32> to vector<8x32xf32>
    %25 = arith.addf %22, %24 : vector<8x32xf32>
    %c0_22 = arith.constant 0 : index
    %c0_23 = arith.constant 0 : index
    %26 = vector.load %arg8[%c0_22, %c0_23] : memref<8x32xf32, #tpu.memory_space<vmem>>, vector<8x32xf32>
    tpu.vector_store %arg8[%c0_22, %c0_23], %25 {strides = array<i32>} : memref<8x32xf32, #tpu.memory_space<vmem>>, vector<8x32xf32>,
    return
  }
  func.func @transform_0(%arg0: i32) -> (i32, i32) {
    %c0_i32 = arith.constant 0 : i32
    %c0_i32_0 = arith.constant 0 : i32
    return %arg0, %c0_i32 : i32, i32
  }
  func.func @transform_1(%arg0: i32) -> (i32, i32) {
    %c0_i32 = arith.constant 0 : i32
    %c0_i32_0 = arith.constant 0 : i32
    %c0_i32_1 = arith.constant 0 : i32
    return %c0_i32, %c0_i32_0 : i32, i32
  }
  func.func @transform_2(%arg0: i32) -> (i32, i32) {
    %c0_i32 = arith.constant 0 : i32
    %c0_i32_0 = arith.constant 0 : i32
    %c0_i32_1 = arith.constant 0 : i32
    return %c0_i32, %c0_i32_0 : i32, i32
  }
  func.func @transform_3(%arg0: i32) -> (i32, i32) {
    %c0_i32 = arith.constant 0 : i32
    %c0_i32_0 = arith.constant 0 : i32
    %c0_i32_1 = arith.constant 0 : i32
    return %c0_i32, %c0_i32_0 : i32, i32
  }
  func.func @transform_4(%arg0: i32) -> (i32, i32) {
    %c0_i32 = arith.constant 0 : i32
    %c0_i32_0 = arith.constant 0 : i32
    %c0_i32_1 = arith.constant 0 : i32
    return %c0_i32, %c0_i32_0 : i32, i32
  }
  func.func @transform_5(%arg0: i32) -> (i32, i32) {
    %c0_i32 = arith.constant 0 : i32
    %c0_i32_0 = arith.constant 0 : i32
    %c0_i32_1 = arith.constant 0 : i32
    return %c0_i32, %c0_i32_0 : i32, i32
  }
  func.func @transform_6(%arg0: i32) -> (i32, i32) {
    %c0_i32 = arith.constant 0 : i32
    %c0_i32_0 = arith.constant 0 : i32
    %c0_i32_1 = arith.constant 0 : i32
    return %c0_i32, %c0_i32_0 : i32, i32
  }
  func.func @transform_7(%arg0: i32) -> (i32, i32) {
    %c0_i32 = arith.constant 0 : i32
    %c0_i32_0 = arith.constant 0 : i32
    return %arg0, %c0_i32 : i32, i32
  }
}

</mosaic_0001>

<llo_original>
// kernel: tpu_custom_call.1
$region0: #{tpu_custom_call.1}
  #allocation0 [shape = 'u32[]', space=smem, size = 0x4, offset = 0x4, fixed_abs, tag = 'smem constant byte address 0x4 - core index']
  #allocation1 [shape = 'u32[144,128]{1,0:T(1,128)}', space=vmem, size = 0x12000, scoped, tag = 'internal scratch']
  #allocation2 [shape = 'f32[8,96]{1,0:T(8,128)}', space=vmem, size = 0x1000, scoped, tag = 'scratch operand']
  %s0 = inlined_call_operand.vmem [shape: f32[8,16], index: 0, kind: input, shape index: {}]
  %s1 = inlined_call_operand.vmem [shape: f32[32,32], index: 1, kind: input, shape index: {}]
  %s2 = inlined_call_operand.vmem [shape: f32[1,32], index: 2, kind: input, shape index: {}]
  %s3 = inlined_call_operand.vmem [shape: f32[16,32], index: 3, kind: input, shape index: {}]
  %s4 = inlined_call_operand.vmem [shape: f32[1,32], index: 4, kind: input, shape index: {}]
  %s5 = inlined_call_operand.vmem [shape: f32[96,32], index: 5, kind: input, shape index: {}]
  %s6 = inlined_call_operand.vmem [shape: f32[1,32], index: 6, kind: input, shape index: {}]
  %s7 = inlined_call_operand.hbm [shape: f32[8,32], index: 7, kind: output, shape index: {}]
  %s8 = sld [smem:[#allocation0]]
  $region38: #{tpu_custom_call.1} parent=0
    _
  %s10 = ssub.s32 1, %s8
  %s11 = scalar_select 0, %s10, %s8
  $region1: #{tpu_custom_call.1} parent=0
    #allocation3 [shape = 'u8[4096]{0}', space=vmem, size = 0x1000, scoped, tag = 'output window, operand 0, single buffered']
    #allocation4 [shape = 's32[1]{0}', space=sflag, size = 0x4, scoped, tag = 'scoped memory for tpu_custom_call.1']
    %12 = vsyncpa [#allocation4], 0
    // Predicated region
    $region2: #{tpu_custom_call.1} parent=1 // pred_check
      _
    $region3: #{tpu_custom_call.1} parent=1 // pred_check_branch
      %14 = sbr.rel (0) target = $region5
    $region4: #{tpu_custom_call.1} parent=1 // pred_region
      _
    $region5: #{tpu_custom_call.1} parent=1 // pred_fallthru
      _
    // Predicated region
    $region6: #{tpu_custom_call.1} parent=1 // pred_check
      _
    $region7: #{tpu_custom_call.1} parent=1 // pred_check_branch
      %16 = sbr.rel (0) target = $region9
    $region8: #{tpu_custom_call.1} parent=1 // pred_region
      _
    $region9: #{tpu_custom_call.1} parent=1 // pred_fallthru
      _
    // Predicated region
    $region10: #{tpu_custom_call.1} parent=1 // pred_check
      _
    $region11: #{tpu_custom_call.1} parent=1 // pred_check_branch
      %18 = sbr.rel (0) target = $region13
    $region12: #{tpu_custom_call.1} parent=1 // pred_region
      _
    $region13: #{tpu_custom_call.1} parent=1 // pred_fallthru
      _
    // Predicated region
    $region14: #{tpu_custom_call.1} parent=1 // pred_check
      _
    $region15: #{tpu_custom_call.1} parent=1 // pred_check_branch
      %20 = sbr.rel (0) target = $region17
    $region16: #{tpu_custom_call.1} parent=1 // pred_region
      _
    $region17: #{tpu_custom_call.1} parent=1 // pred_fallthru
      _
    // Predicated region
    $region18: #{tpu_custom_call.1} parent=1 // pred_check
      _
    $region19: #{tpu_custom_call.1} parent=1 // pred_check_branch
      %22 = sbr.rel (0) target = $region21
    $region20: #{tpu_custom_call.1} parent=1 // pred_region
      _
    $region21: #{tpu_custom_call.1} parent=1 // pred_fallthru
      _
    // Predicated region
    $region22: #{tpu_custom_call.1} parent=1 // pred_check
      _
    $region23: #{tpu_custom_call.1} parent=1 // pred_check_branch
      %24 = sbr.rel (0) target = $region25
    $region24: #{tpu_custom_call.1} parent=1 // pred_region
      _
    $region25: #{tpu_custom_call.1} parent=1 // pred_fallthru
      _
    // Predicated region
    $region26: #{tpu_custom_call.1} parent=1 // pred_check
      _
    $region27: #{tpu_custom_call.1} parent=1 // pred_check_branch
      %26 = sbr.rel (0) target = $region29
    $region28: #{tpu_custom_call.1} parent=1 // pred_region
      _
    $region29: #{tpu_custom_call.1} parent=1 // pred_fallthru
      _
    %v27 = vld [vmem:[%s1] sm:$0xff]
    %v28 = vld [vmem:[%s1 + $0x8] sm:$0xff]
    %v29 = vld [vmem:[%s1 + $0x10] sm:$0xff]
    %v30 = vld [vmem:[%s1 + $0x18] sm:$0xff]
    %v31 = vld [vmem:[%s0] sm:$0xff]
    %v32 = vld [vmem:[%s3] sm:$0xff]
    %v33 = vld [vmem:[%s3 + $0x8] sm:$0xff]
    %v34 = vld [vmem:[%s4] sm:$0x1]
    %v36 = vlaneseq
    %v37 = vshrl.u32 %v36, 7
    %v38 = vsub.s32 0, %v37
    %v39 = vrot.slane %v34, %v38
    %vm41 = vcmask 130048
    %v43 = vsel %vm41, %v31, 0
    %45 = vmatprep.subr.mxu0 0.0
    %46 = vmatpush1.msra.mxu0 %v32
    %47 = vmatprep.subr.mxu0 0.0
    %48 = vmatpush1.msra.mxu0 %v33
    %49 = vmatprep.subr.mxu0 0.0
    %50 = vmatpush1.msra.mxu0 0.0
    %51 = vmatprep.subr.mxu0 0.0
    %52 = vmatpush1.msra.mxu0 0.0
    %53 = vmatprep.subr.mxu0 0.0
    %54 = vmatpush1.msra.mxu0 0.0
    %55 = vmatprep.subr.mxu0 0.0
    %56 = vmatpush1.msra.mxu0 0.0
    %57 = vmatprep.subr.mxu0 0.0
    %58 = vmatpush1.msra.mxu0 0.0
    %59 = vmatprep.subr.mxu0 0.0
    %60 = vmatpush1.msra.mxu0 0.0
    %61 = vmatprep.subr.mxu0 0.0
    %62 = vmatpush1.msra.mxu0 0.0
    %63 = vmatprep.subr.mxu0 0.0
    %64 = vmatpush1.msra.mxu0 0.0
    %65 = vmatprep.subr.mxu0 0.0
    %66 = vmatpush1.msra.mxu0 0.0
    %67 = vmatprep.subr.mxu0 0.0
    %68 = vmatpush1.msra.mxu0 0.0
    %69 = vmatprep.subr.mxu0 0.0
    %70 = vmatpush1.msra.mxu0 0.0
    %71 = vmatprep.subr.mxu0 0.0
    %72 = vmatpush1.msra.mxu0 0.0
    %73 = vmatprep.subr.mxu0 0.0
    %74 = vmatpush1.msra.mxu0 0.0
    %75 = vmatprep.subr.mxu0 0.0
    %76 = vmatpush1.msra.mxu0 0.0
    %77 = vmatprep.subr.mxu0 0.0
    %78 = vmatpush1.msra.mxu0 0.0
    %79 = vmatprep.subr.mxu0 0.0
    %80 = vmatpush1.msra.mxu0 0.0
    %81 = vmatprep.subr.mxu0 0.0
    %82 = vmatpush1.msra.mxu0 0.0
    %83 = vmatprep.subr.mxu0 0.0
    %84 = vmatpush1.msra.mxu0 0.0
    %85 = vmatprep.subr.mxu0 0.0
    %86 = vmatpush1.msra.mxu0 0.0
    %87 = vmatprep.subr.mxu0 0.0
    %88 = vmatpush1.msra.mxu0 0.0
    %89 = vmatprep.subr.mxu0 0.0
    %90 = vmatpush1.msra.mxu0 0.0
    %91 = vmatprep.subr.mxu0 0.0
    %92 = vmatpush1.msra.mxu0 0.0
    %93 = vmatprep.subr.mxu0 0.0
    %94 = vmatpush1.msra.mxu0 0.0
    %95 = vmatprep.subr.mxu0 0.0
    %96 = vmatpush1.msra.mxu0 0.0
    %97 = vmatprep.subr.mxu0 0.0
    %98 = vmatpush1.msra.mxu0 0.0
    %99 = vmatprep.subr.mxu0 0.0
    %100 = vmatpush1.msra.mxu0 0.0
    %101 = vmatprep.subr.mxu0 0.0
    %102 = vmatpush1.msra.mxu0 0.0
    %103 = vmatprep.subr.mxu0 0.0
    %104 = vmatpush1.msra.mxu0 0.0
    %105 = vmatprep.subr.mxu0 0.0
    %106 = vmatpush1.msra.mxu0 0.0
    %107 = vmatprep.subr.mxu0 0.0
    %108 = vmatpush1.msra.mxu0 0.0
    %109 = vmatprep.mubr.f32.mxu0 0.0
    %110 = vmatmul.mubr.f32.gmra.mrb[0].mxu0 %v43
    %v111 = vpop.f32.mrb[0].mxu0
    %v112 = vadd.f32 %v39, %v111
    %v113 = vpop.f32.mrb[0].mxu0
    %114 = vdwg.mxu0
    %v115 = vld [vmem:[%s2] sm:$0x1]
    %v117 = vlaneseq
    %v118 = vshrl.u32 %v117, 7
    %v119 = vsub.s32 0, %v118
    %v120 = vrot.slane %v115, %v119
    %v122 = vadd.f32 %v112, %v120
    %v123 = vtanh.pop %v122
    %vm124 = vcmask 261120
    %125 = vst.msk [vmem:[#allocation2] sm:$0xff] %vm124, %v123
    %v127 = vsel %vm124, %v123, 0
    %129 = vmatprep.subr.mxu0 0.0
    %130 = vmatpush1.msra.mxu0 %v27
    %131 = vmatprep.subr.mxu0 0.0
    %132 = vmatpush1.msra.mxu0 %v28
    %133 = vmatprep.subr.mxu0 0.0
    %134 = vmatpush1.msra.mxu0 %v29
    %135 = vmatprep.subr.mxu0 0.0
    %136 = vmatpush1.msra.mxu0 %v30
    %137 = vmatprep.subr.mxu0 0.0
    %138 = vmatpush1.msra.mxu0 0.0
    %139 = vmatprep.subr.mxu0 0.0
    %140 = vmatpush1.msra.mxu0 0.0
    %141 = vmatprep.subr.mxu0 0.0
    %142 = vmatpush1.msra.mxu0 0.0
    %143 = vmatprep.subr.mxu0 0.0
    %144 = vmatpush1.msra.mxu0 0.0
    %145 = vmatprep.subr.mxu0 0.0
    %146 = vmatpush1.msra.mxu0 0.0
    %147 = vmatprep.subr.mxu0 0.0
    %148 = vmatpush1.msra.mxu0 0.0
    %149 = vmatprep.subr.mxu0 0.0
    %150 = vmatpush1.msra.mxu0 0.0
    %151 = vmatprep.subr.mxu0 0.0
    %152 = vmatpush1.msra.mxu0 0.0
    %153 = vmatprep.subr.mxu0 0.0
    %154 = vmatpush1.msra.mxu0 0.0
    %155 = vmatprep.subr.mxu0 0.0
    %156 = vmatpush1.msra.mxu0 0.0
    %157 = vmatprep.subr.mxu0 0.0
    %158 = vmatpush1.msra.mxu0 0.0
    %159 = vmatprep.subr.mxu0 0.0
    %160 = vmatpush1.msra.mxu0 0.0
    %161 = vmatprep.subr.mxu0 0.0
    %162 = vmatpush1.msra.mxu0 0.0
    %163 = vmatprep.subr.mxu0 0.0
    %164 = vmatpush1.msra.mxu0 0.0
    %165 = vmatprep.subr.mxu0 0.0
    %166 = vmatpush1.msra.mxu0 0.0
    %167 = vmatprep.subr.mxu0 0.0
    %168 = vmatpush1.msra.mxu0 0.0
    %169 = vmatprep.subr.mxu0 0.0
    %170 = vmatpush1.msra.mxu0 0.0
    %171 = vmatprep.subr.mxu0 0.0
    %172 = vmatpush1.msra.mxu0 0.0
    %173 = vmatprep.subr.mxu0 0.0
    %174 = vmatpush1.msra.mxu0 0.0
    %175 = vmatprep.subr.mxu0 0.0
    %176 = vmatpush1.msra.mxu0 0.0
    %177 = vmatprep.subr.mxu0 0.0
    %178 = vmatpush1.msra.mxu0 0.0
    %179 = vmatprep.subr.mxu0 0.0
    %180 = vmatpush1.msra.mxu0 0.0
    %181 = vmatprep.subr.mxu0 0.0
    %182 = vmatpush1.msra.mxu0 0.0
    %183 = vmatprep.subr.mxu0 0.0
    %184 = vmatpush1.msra.mxu0 0.0
    %185 = vmatprep.subr.mxu0 0.0
    %186 = vmatpush1.msra.mxu0 0.0
    %187 = vmatprep.subr.mxu0 0.0
    %188 = vmatpush1.msra.mxu0 0.0
    %189 = vmatprep.subr.mxu0 0.0
    %190 = vmatpush1.msra.mxu0 0.0
    %191 = vmatprep.subr.mxu0 0.0
    %192 = vmatpush1.msra.mxu0 0.0
    %193 = vmatprep.mubr.f32.mxu0 0.0
    %194 = vmatmul.mubr.f32.gmra.mrb[0].mxu0 %v127
    %v195 = vpop.f32.mrb[0].mxu0
    %v196 = vadd.f32 %v122, %v195
    %v197 = vpop.f32.mrb[0].mxu0
    %198 = vdwg.mxu0
    %v199 = vtanh.pop %v196
    %201 = vrot.lane.b32.xlu0 %v199, 32
    %v202 = vpop.permute.xlu0 %201
    %vm204 = vcmask 523520
    %205 = vst.msk [vmem:[#allocation2] sm:$0xff] %vm204, %v202
    %v206 = vsel %vm124, %v199, 0
    %208 = vmatprep.subr.mxu0 0.0
    %209 = vmatpush1.msra.mxu0 %v27
    %210 = vmatprep.subr.mxu0 0.0
    %211 = vmatpush1.msra.mxu0 %v28
    %212 = vmatprep.subr.mxu0 0.0
    %213 = vmatpush1.msra.mxu0 %v29
    %214 = vmatprep.subr.mxu0 0.0
    %215 = vmatpush1.msra.mxu0 %v30
    %216 = vmatprep.subr.mxu0 0.0
    %217 = vmatpush1.msra.mxu0 0.0
    %218 = vmatprep.subr.mxu0 0.0
    %219 = vmatpush1.msra.mxu0 0.0
    %220 = vmatprep.subr.mxu0 0.0
    %221 = vmatpush1.msra.mxu0 0.0
    %222 = vmatprep.subr.mxu0 0.0
    %223 = vmatpush1.msra.mxu0 0.0
    %224 = vmatprep.subr.mxu0 0.0
    %225 = vmatpush1.msra.mxu0 0.0
    %226 = vmatprep.subr.mxu0 0.0
    %227 = vmatpush1.msra.mxu0 0.0
    %228 = vmatprep.subr.mxu0 0.0
    %229 = vmatpush1.msra.mxu0 0.0
    %230 = vmatprep.subr.mxu0 0.0
    %231 = vmatpush1.msra.mxu0 0.0
    %232 = vmatprep.subr.mxu0 0.0
    %233 = vmatpush1.msra.mxu0 0.0
    %234 = vmatprep.subr.mxu0 0.0
    %235 = vmatpush1.msra.mxu0 0.0
    %236 = vmatprep.subr.mxu0 0.0
    %237 = vmatpush1.msra.mxu0 0.0
    %238 = vmatprep.subr.mxu0 0.0
    %239 = vmatpush1.msra.mxu0 0.0
    %240 = vmatprep.subr.mxu0 0.0
    %241 = vmatpush1.msra.mxu0 0.0
    %242 = vmatprep.subr.mxu0 0.0
    %243 = vmatpush1.msra.mxu0 0.0
    %244 = vmatprep.subr.mxu0 0.0
    %245 = vmatpush1.msra.mxu0 0.0
    %246 = vmatprep.subr.mxu0 0.0
    %247 = vmatpush1.msra.mxu0 0.0
    %248 = vmatprep.subr.mxu0 0.0
    %249 = vmatpush1.msra.mxu0 0.0
    %250 = vmatprep.subr.mxu0 0.0
    %251 = vmatpush1.msra.mxu0 0.0
    %252 = vmatprep.subr.mxu0 0.0
    %253 = vmatpush1.msra.mxu0 0.0
    %254 = vmatprep.subr.mxu0 0.0
    %255 = vmatpush1.msra.mxu0 0.0
    %256 = vmatprep.subr.mxu0 0.0
    %257 = vmatpush1.msra.mxu0 0.0
    %258 = vmatprep.subr.mxu0 0.0
    %259 = vmatpush1.msra.mxu0 0.0
    %260 = vmatprep.subr.mxu0 0.0
    %261 = vmatpush1.msra.mxu0 0.0
    %262 = vmatprep.subr.mxu0 0.0
    %263 = vmatpush1.msra.mxu0 0.0
    %264 = vmatprep.subr.mxu0 0.0
    %265 = vmatpush1.msra.mxu0 0.0
    %266 = vmatprep.subr.mxu0 0.0
    %267 = vmatpush1.msra.mxu0 0.0
    %268 = vmatprep.subr.mxu0 0.0
    %269 = vmatpush1.msra.mxu0 0.0
    %270 = vmatprep.subr.mxu0 0.0
    %271 = vmatpush1.msra.mxu0 0.0
    %272 = vmatprep.mubr.f32.mxu0 0.0
    %273 = vmatmul.mubr.f32.gmra.mrb[0].mxu0 %v206
    %v274 = vpop.f32.mrb[0].mxu0
    %v275 = vadd.f32 %v122, %v274
    %v276 = vpop.f32.mrb[0].mxu0
    %277 = vdwg.mxu0
    %v278 = vtanh.pop %v275
    %280 = vrot.lane.b32.xlu0 %v278, 64
    %v281 = vpop.permute.xlu0 %280
    %vm283 = vcmask 785920
    %284 = vst.msk [vmem:[#allocation2] sm:$0xff] %vm283, %v281
    %v285 = vld [vmem:[#allocation2] sm:$0xff]
    %v286 = vld [vmem:[%s5] sm:$0xff]
    %v287 = vld [vmem:[%s5 + $0x8] sm:$0xff]
    %v288 = vld [vmem:[%s5 + $0x10] sm:$0xff]
    %v289 = vld [vmem:[%s5 + $0x18] sm:$0xff]
    %v290 = vld [vmem:[%s5 + $0x20] sm:$0xff]
    %v291 = vld [vmem:[%s5 + $0x28] sm:$0xff]
    %v292 = vld [vmem:[%s5 + $0x30] sm:$0xff]
    %v293 = vld [vmem:[%s5 + $0x38] sm:$0xff]
    %v294 = vld [vmem:[%s5 + $0x40] sm:$0xff]
    %v295 = vld [vmem:[%s5 + $0x48] sm:$0xff]
    %v296 = vld [vmem:[%s5 + $0x50] sm:$0xff]
    %v297 = vld [vmem:[%s5 + $0x58] sm:$0xff]
    %v298 = vld [vmem:[%s6] sm:$0x1]
    %v300 = vlaneseq
    %v301 = vshrl.u32 %v300, 7
    %v302 = vsub.s32 0, %v301
    %v303 = vrot.slane %v298, %v302
    %vm305 = vcmask 785408
    %v307 = vsel %vm305, %v285, 0
    %309 = vmatprep.subr.mxu0 0.0
    %310 = vmatpush1.msra.mxu0 %v286
    %311 = vmatprep.subr.mxu0 0.0
    %312 = vmatpush1.msra.mxu0 %v287
    %313 = vmatprep.subr.mxu0 0.0
    %314 = vmatpush1.msra.mxu0 %v288
    %315 = vmatprep.subr.mxu0 0.0
    %316 = vmatpush1.msra.mxu0 %v289
    %317 = vmatprep.subr.mxu0 0.0
    %318 = vmatpush1.msra.mxu0 %v290
    %319 = vmatprep.subr.mxu0 0.0
    %320 = vmatpush1.msra.mxu0 %v291
    %321 = vmatprep.subr.mxu0 0.0
    %322 = vmatpush1.msra.mxu0 %v292
    %323 = vmatprep.subr.mxu0 0.0
    %324 = vmatpush1.msra.mxu0 %v293
    %325 = vmatprep.subr.mxu0 0.0
    %326 = vmatpush1.msra.mxu0 %v294
    %327 = vmatprep.subr.mxu0 0.0
    %328 = vmatpush1.msra.mxu0 %v295
    %329 = vmatprep.subr.mxu0 0.0
    %330 = vmatpush1.msra.mxu0 %v296
    %331 = vmatprep.subr.mxu0 0.0
    %332 = vmatpush1.msra.mxu0 %v297
    %333 = vmatprep.subr.mxu0 0.0
    %334 = vmatpush1.msra.mxu0 0.0
    %335 = vmatprep.subr.mxu0 0.0
    %336 = vmatpush1.msra.mxu0 0.0
    %337 = vmatprep.subr.mxu0 0.0
    %338 = vmatpush1.msra.mxu0 0.0
    %339 = vmatprep.subr.mxu0 0.0
    %340 = vmatpush1.msra.mxu0 0.0
    %341 = vmatprep.subr.mxu0 0.0
    %342 = vmatpush1.msra.mxu0 0.0
    %343 = vmatprep.subr.mxu0 0.0
    %344 = vmatpush1.msra.mxu0 0.0
    %345 = vmatprep.subr.mxu0 0.0
    %346 = vmatpush1.msra.mxu0 0.0
    %347 = vmatprep.subr.mxu0 0.0
    %348 = vmatpush1.msra.mxu0 0.0
    %349 = vmatprep.subr.mxu0 0.0
    %350 = vmatpush1.msra.mxu0 0.0
    %351 = vmatprep.subr.mxu0 0.0
    %352 = vmatpush1.msra.mxu0 0.0
    %353 = vmatprep.subr.mxu0 0.0
    %354 = vmatpush1.msra.mxu0 0.0
    %355 = vmatprep.subr.mxu0 0.0
    %356 = vmatpush1.msra.mxu0 0.0
    %357 = vmatprep.subr.mxu0 0.0
    %358 = vmatpush1.msra.mxu0 0.0
    %359 = vmatprep.subr.mxu0 0.0
    %360 = vmatpush1.msra.mxu0 0.0
    %361 = vmatprep.subr.mxu0 0.0
    %362 = vmatpush1.msra.mxu0 0.0
    %363 = vmatprep.subr.mxu0 0.0
    %364 = vmatpush1.msra.mxu0 0.0
    %365 = vmatprep.subr.mxu0 0.0
    %366 = vmatpush1.msra.mxu0 0.0
    %367 = vmatprep.subr.mxu0 0.0
    %368 = vmatpush1.msra.mxu0 0.0
    %369 = vmatprep.subr.mxu0 0.0
    %370 = vmatpush1.msra.mxu0 0.0
    %371 = vmatprep.subr.mxu0 0.0
    %372 = vmatpush1.msra.mxu0 0.0
    %373 = vmatprep.mubr.f32.mxu0 0.0
    %374 = vmatmul.mubr.f32.gmra.mrb[0].mxu0 %v307
    %v375 = vpop.f32.mrb[0].mxu0
    %v376 = vadd.f32 %v303, %v375
    %v377 = vpop.f32.mrb[0].mxu0
    %378 = vdwg.mxu0
    %379 = vst.msk [vmem:[#allocation3] sm:$0xff] %vm124, %v376
    // Predicated region
    $region30: #{tpu_custom_call.1} parent=1 // pred_check
      _
    $region31: #{tpu_custom_call.1} parent=1 // pred_check_branch
      %381 = sbr.rel (0) target = $region33
    $region32: #{tpu_custom_call.1} parent=1 // pred_region
      %s383 = ssub.s32 128, 128
      %384 = vsyncadd [#allocation4], %s383
      %s386 = sshll.u32 [#allocation3], 4
      %s387 = int_to_ptr.vmem [resolvable:$true] %s386
      %389 = dma.vmem_to_hbm [thread:$0]  %s387, 128, %s7, [#allocation4]
    $region33: #{tpu_custom_call.1} parent=1 // pred_fallthru
      _
    // Predicated region
    $region34: #{tpu_custom_call.1} parent=1 // pred_check
      _
    $region35: #{tpu_custom_call.1} parent=1 // pred_check_branch
      %391 = sbr.rel (0) target = $region37
    $region36: #{tpu_custom_call.1} parent=1 // pred_region
      %392 = dma.done [#allocation4], 128
    $region37: #{tpu_custom_call.1} parent=1 // pred_fallthru
      _
    %393 = vsyncpa [#allocation4], 1

// kernel: tpu_custom_call.1
$region0: #{tpu_custom_call.1}
  #allocation0 [shape = 'u32[]', space=smem, size = 0x4, offset = 0x4, fixed_abs, tag = 'smem constant byte address 0x4 - core index']
  #allocation1 [shape = 'u32[144,128]{1,0:T(1,128)}', space=vmem, size = 0x12000, scoped, tag = 'internal scratch']
  #allocation2 [shape = 'f32[8,96]{1,0:T(8,128)}', space=vmem, size = 0x1000, scoped, tag = 'scratch operand']
  %s0 = inlined_call_operand.vmem [shape: f32[8,16], index: 0, kind: input, shape index: {}]
  %s1 = inlined_call_operand.vmem [shape: f32[32,32], index: 1, kind: input, shape index: {}]
  %s2 = inlined_call_operand.vmem [shape: f32[1,32], index: 2, kind: input, shape index: {}]
  %s3 = inlined_call_operand.vmem [shape: f32[16,32], index: 3, kind: input, shape index: {}]
  %s4 = inlined_call_operand.vmem [shape: f32[1,32], index: 4, kind: input, shape index: {}]
  %s5 = inlined_call_operand.vmem [shape: f32[96,32], index: 5, kind: input, shape index: {}]
  %s6 = inlined_call_operand.vmem [shape: f32[1,32], index: 6, kind: input, shape index: {}]
  %s7 = inlined_call_operand.hbm [shape: f32[8,32], index: 7, kind: output, shape index: {}]
  %s8 = sld [smem:[#allocation0]]
  $region38: #{tpu_custom_call.1} parent=0
    _
  %s10 = ssub.s32 1, %s8
  %s11 = scalar_select 0, %s10, %s8
  $region1: #{tpu_custom_call.1} parent=0
    #allocation3 [shape = 'u8[4096]{0}', space=vmem, size = 0x1000, scoped, tag = 'output window, operand 0, single buffered']
    #allocation4 [shape = 's32[1]{0}', space=sflag, size = 0x4, scoped, tag = 'scoped memory for tpu_custom_call.1']
    %12 = vsyncpa [#allocation4], 0
    // Predicated region
    $region2: #{tpu_custom_call.1} parent=1 // pred_check
      _
    $region3: #{tpu_custom_call.1} parent=1 // pred_check_branch
      %14 = sbr.rel (0) target = $region5
    $region4: #{tpu_custom_call.1} parent=1 // pred_region
      _
    $region5: #{tpu_custom_call.1} parent=1 // pred_fallthru
      _
    // Predicated region
    $region6: #{tpu_custom_call.1} parent=1 // pred_check
      _
    $region7: #{tpu_custom_call.1} parent=1 // pred_check_branch
      %16 = sbr.rel (0) target = $region9
    $region8: #{tpu_custom_call.1} parent=1 // pred_region
      _
    $region9: #{tpu_custom_call.1} parent=1 // pred_fallthru
      _
    // Predicated region
    $region10: #{tpu_custom_call.1} parent=1 // pred_check
      _
    $region11: #{tpu_custom_call.1} parent=1 // pred_check_branch
      %18 = sbr.rel (0) target = $region13
    $region12: #{tpu_custom_call.1} parent=1 // pred_region
      _
    $region13: #{tpu_custom_call.1} parent=1 // pred_fallthru
      _
    // Predicated region
    $region14: #{tpu_custom_call.1} parent=1 // pred_check
      _
    $region15: #{tpu_custom_call.1} parent=1 // pred_check_branch
      %20 = sbr.rel (0) target = $region17
    $region16: #{tpu_custom_call.1} parent=1 // pred_region
      _
    $region17: #{tpu_custom_call.1} parent=1 // pred_fallthru
      _
    // Predicated region
    $region18: #{tpu_custom_call.1} parent=1 // pred_check
      _
    $region19: #{tpu_custom_call.1} parent=1 // pred_check_branch
      %22 = sbr.rel (0) target = $region21
    $region20: #{tpu_custom_call.1} parent=1 // pred_region
      _
    $region21: #{tpu_custom_call.1} parent=1 // pred_fallthru
      _
    // Predicated region
    $region22: #{tpu_custom_call.1} parent=1 // pred_check
      _
    $region23: #{tpu_custom_call.1} parent=1 // pred_check_branch
      %24 = sbr.rel (0) target = $region25
    $region24: #{tpu_custom_call.1} parent=1 // pred_region
      _
    $region25: #{tpu_custom_call.1} parent=1 // pred_fallthru
      _
    // Predicated region
    $region26: #{tpu_custom_call.1} parent=1 // pred_check
      _
    $region27: #{tpu_custom_call.1} parent=1 // pred_check_branch
      %26 = sbr.rel (0) target = $region29
    $region28: #{tpu_custom_call.1} parent=1 // pred_region
      _
    $region29: #{tpu_custom_call.1} parent=1 // pred_fallthru
      _
    %v27 = vld [vmem:[%s1] sm:$0xff]
    %v28 = vld [vmem:[%s1 + $0x8] sm:$0xff]
    %v29 = vld [vmem:[%s1 + $0x10] sm:$0xff]
    %v30 = vld [vmem:[%s1 + $0x18] sm:$0xff]
    %v31 = vld [vmem:[%s0] sm:$0xff]
    %v32 = vld [vmem:[%s3] sm:$0xff]
    %v33 = vld [vmem:[%s3 + $0x8] sm:$0xff]
    %v34 = vld [vmem:[%s4] sm:$0x1]
    %v36 = vlaneseq
    %v37 = vshrl.u32 %v36, 7
    %v38 = vsub.s32 0, %v37
    %v39 = vrot.slane %v34, %v38
    %vm41 = vcmask 130048
    %v43 = vsel %vm41, %v31, 0
    %45 = vmatprep.subr.mxu0 0.0
    %46 = vmatpush1.msra.mxu0 %v32
    %47 = vmatprep.subr.mxu0 0.0
    %48 = vmatpush1.msra.mxu0 %v33
    %49 = vmatprep.subr.mxu0 0.0
    %50 = vmatpush1.msra.mxu0 0.0
    %51 = vmatprep.subr.mxu0 0.0
    %52 = vmatpush1.msra.mxu0 0.0
    %53 = vmatprep.subr.mxu0 0.0
    %54 = vmatpush1.msra.mxu0 0.0
    %55 = vmatprep.subr.mxu0 0.0
    %56 = vmatpush1.msra.mxu0 0.0
    %57 = vmatprep.subr.mxu0 0.0
    %58 = vmatpush1.msra.mxu0 0.0
    %59 = vmatprep.subr.mxu0 0.0
    %60 = vmatpush1.msra.mxu0 0.0
    %61 = vmatprep.subr.mxu0 0.0
    %62 = vmatpush1.msra.mxu0 0.0
    %63 = vmatprep.subr.mxu0 0.0
    %64 = vmatpush1.msra.mxu0 0.0
    %65 = vmatprep.subr.mxu0 0.0
    %66 = vmatpush1.msra.mxu0 0.0
    %67 = vmatprep.subr.mxu0 0.0
    %68 = vmatpush1.msra.mxu0 0.0
    %69 = vmatprep.subr.mxu0 0.0
    %70 = vmatpush1.msra.mxu0 0.0
    %71 = vmatprep.subr.mxu0 0.0
    %72 = vmatpush1.msra.mxu0 0.0
    %73 = vmatprep.subr.mxu0 0.0
    %74 = vmatpush1.msra.mxu0 0.0
    %75 = vmatprep.subr.mxu0 0.0
    %76 = vmatpush1.msra.mxu0 0.0
    %77 = vmatprep.subr.mxu0 0.0
    %78 = vmatpush1.msra.mxu0 0.0
    %79 = vmatprep.subr.mxu0 0.0
    %80 = vmatpush1.msra.mxu0 0.0
    %81 = vmatprep.subr.mxu0 0.0
    %82 = vmatpush1.msra.mxu0 0.0
    %83 = vmatprep.subr.mxu0 0.0
    %84 = vmatpush1.msra.mxu0 0.0
    %85 = vmatprep.subr.mxu0 0.0
    %86 = vmatpush1.msra.mxu0 0.0
    %87 = vmatprep.subr.mxu0 0.0
    %88 = vmatpush1.msra.mxu0 0.0
    %89 = vmatprep.subr.mxu0 0.0
    %90 = vmatpush1.msra.mxu0 0.0
    %91 = vmatprep.subr.mxu0 0.0
    %92 = vmatpush1.msra.mxu0 0.0
    %93 = vmatprep.subr.mxu0 0.0
    %94 = vmatpush1.msra.mxu0 0.0
    %95 = vmatprep.subr.mxu0 0.0
    %96 = vmatpush1.msra.mxu0 0.0
    %97 = vmatprep.subr.mxu0 0.0
    %98 = vmatpush1.msra.mxu0 0.0
    %99 = vmatprep.subr.mxu0 0.0
    %100 = vmatpush1.msra.mxu0 0.0
    %101 = vmatprep.subr.mxu0 0.0
    %102 = vmatpush1.msra.mxu0 0.0
    %103 = vmatprep.subr.mxu0 0.0
    %104 = vmatpush1.msra.mxu0 0.0
    %105 = vmatprep.subr.mxu0 0.0
    %106 = vmatpush1.msra.mxu0 0.0
    %107 = vmatprep.subr.mxu0 0.0
    %108 = vmatpush1.msra.mxu0 0.0
    %109 = vmatprep.mubr.f32.mxu0 0.0
    %110 = vmatmul.mubr.f32.gmra.mrb[0].mxu0 %v43
    %v111 = vpop.f32.mrb[0].mxu0
    %v112 = vadd.f32 %v39, %v111
    %v113 = vpop.f32.mrb[0].mxu0
    %114 = vdwg.mxu0
    %v115 = vld [vmem:[%s2] sm:$0x1]
    %v117 = vlaneseq
    %v118 = vshrl.u32 %v117, 7
    %v119 = vsub.s32 0, %v118
    %v120 = vrot.slane %v115, %v119
    %v122 = vadd.f32 %v112, %v120
    %v123 = vtanh.pop %v122
    %vm124 = vcmask 261120
    %125 = vst.msk [vmem:[#allocation2] sm:$0xff] %vm124, %v123
    %v127 = vsel %vm124, %v123, 0
    %129 = vmatprep.subr.mxu0 0.0
    %130 = vmatpush1.msra.mxu0 %v27
    %131 = vmatprep.subr.mxu0 0.0
    %132 = vmatpush1.msra.mxu0 %v28
    %133 = vmatprep.subr.mxu0 0.0
    %134 = vmatpush1.msra.mxu0 %v29
    %135 = vmatprep.subr.mxu0 0.0
    %136 = vmatpush1.msra.mxu0 %v30
    %137 = vmatprep.subr.mxu0 0.0
    %138 = vmatpush1.msra.mxu0 0.0
    %139 = vmatprep.subr.mxu0 0.0
    %140 = vmatpush1.msra.mxu0 0.0
    %141 = vmatprep.subr.mxu0 0.0
    %142 = vmatpush1.msra.mxu0 0.0
    %143 = vmatprep.subr.mxu0 0.0
    %144 = vmatpush1.msra.mxu0 0.0
    %145 = vmatprep.subr.mxu0 0.0
    %146 = vmatpush1.msra.mxu0 0.0
    %147 = vmatprep.subr.mxu0 0.0
    %148 = vmatpush1.msra.mxu0 0.0
    %149 = vmatprep.subr.mxu0 0.0
    %150 = vmatpush1.msra.mxu0 0.0
    %151 = vmatprep.subr.mxu0 0.0
    %152 = vmatpush1.msra.mxu0 0.0
    %153 = vmatprep.subr.mxu0 0.0
    %154 = vmatpush1.msra.mxu0 0.0
    %155 = vmatprep.subr.mxu0 0.0
    %156 = vmatpush1.msra.mxu0 0.0
    %157 = vmatprep.subr.mxu0 0.0
    %158 = vmatpush1.msra.mxu0 0.0
    %159 = vmatprep.subr.mxu0 0.0
    %160 = vmatpush1.msra.mxu0 0.0
    %161 = vmatprep.subr.mxu0 0.0
    %162 = vmatpush1.msra.mxu0 0.0
    %163 = vmatprep.subr.mxu0 0.0
    %164 = vmatpush1.msra.mxu0 0.0
    %165 = vmatprep.subr.mxu0 0.0
    %166 = vmatpush1.msra.mxu0 0.0
    %167 = vmatprep.subr.mxu0 0.0
    %168 = vmatpush1.msra.mxu0 0.0
    %169 = vmatprep.subr.mxu0 0.0
    %170 = vmatpush1.msra.mxu0 0.0
    %171 = vmatprep.subr.mxu0 0.0
    %172 = vmatpush1.msra.mxu0 0.0
    %173 = vmatprep.subr.mxu0 0.0
    %174 = vmatpush1.msra.mxu0 0.0
    %175 = vmatprep.subr.mxu0 0.0
    %176 = vmatpush1.msra.mxu0 0.0
    %177 = vmatprep.subr.mxu0 0.0
    %178 = vmatpush1.msra.mxu0 0.0
    %179 = vmatprep.subr.mxu0 0.0
    %180 = vmatpush1.msra.mxu0 0.0
    %181 = vmatprep.subr.mxu0 0.0
    %182 = vmatpush1.msra.mxu0 0.0
    %183 = vmatprep.subr.mxu0 0.0
    %184 = vmatpush1.msra.mxu0 0.0
    %185 = vmatprep.subr.mxu0 0.0
    %186 = vmatpush1.msra.mxu0 0.0
    %187 = vmatprep.subr.mxu0 0.0
    %188 = vmatpush1.msra.mxu0 0.0
    %189 = vmatprep.subr.mxu0 0.0
    %190 = vmatpush1.msra.mxu0 0.0
    %191 = vmatprep.subr.mxu0 0.0
    %192 = vmatpush1.msra.mxu0 0.0
    %193 = vmatprep.mubr.f32.mxu0 0.0
    %194 = vmatmul.mubr.f32.gmra.mrb[0].mxu0 %v127
    %v195 = vpop.f32.mrb[0].mxu0
    %v196 = vadd.f32 %v122, %v195
    %v197 = vpop.f32.mrb[0].mxu0
    %198 = vdwg.mxu0
    %v199 = vtanh.pop %v196
    %201 = vrot.lane.b32.xlu0 %v199, 32
    %v202 = vpop.permute.xlu0 %201
    %vm204 = vcmask 523520
    %205 = vst.msk [vmem:[#allocation2] sm:$0xff] %vm204, %v202
    %v206 = vsel %vm124, %v199, 0
    %208 = vmatprep.subr.mxu0 0.0
    %209 = vmatpush1.msra.mxu0 %v27
    %210 = vmatprep.subr.mxu0 0.0
    %211 = vmatpush1.msra.mxu0 %v28
    %212 = vmatprep.subr.mxu0 0.0
    %213 = vmatpush1.msra.mxu0 %v29
    %214 = vmatprep.subr.mxu0 0.0
    %215 = vmatpush1.msra.mxu0 %v30
    %216 = vmatprep.subr.mxu0 0.0
    %217 = vmatpush1.msra.mxu0 0.0
    %218 = vmatprep.subr.mxu0 0.0
    %219 = vmatpush1.msra.mxu0 0.0
    %220 = vmatprep.subr.mxu0 0.0
    %221 = vmatpush1.msra.mxu0 0.0
    %222 = vmatprep.subr.mxu0 0.0
    %223 = vmatpush1.msra.mxu0 0.0
    %224 = vmatprep.subr.mxu0 0.0
    %225 = vmatpush1.msra.mxu0 0.0
    %226 = vmatprep.subr.mxu0 0.0
    %227 = vmatpush1.msra.mxu0 0.0
    %228 = vmatprep.subr.mxu0 0.0
    %229 = vmatpush1.msra.mxu0 0.0
    %230 = vmatprep.subr.mxu0 0.0
    %231 = vmatpush1.msra.mxu0 0.0
    %232 = vmatprep.subr.mxu0 0.0
    %233 = vmatpush1.msra.mxu0 0.0
    %234 = vmatprep.subr.mxu0 0.0
    %235 = vmatpush1.msra.mxu0 0.0
    %236 = vmatprep.subr.mxu0 0.0
    %237 = vmatpush1.msra.mxu0 0.0
    %238 = vmatprep.subr.mxu0 0.0
    %239 = vmatpush1.msra.mxu0 0.0
    %240 = vmatprep.subr.mxu0 0.0
    %241 = vmatpush1.msra.mxu0 0.0
    %242 = vmatprep.subr.mxu0 0.0
    %243 = vmatpush1.msra.mxu0 0.0
    %244 = vmatprep.subr.mxu0 0.0
    %245 = vmatpush1.msra.mxu0 0.0
    %246 = vmatprep.subr.mxu0 0.0
    %247 = vmatpush1.msra.mxu0 0.0
    %248 = vmatprep.subr.mxu0 0.0
    %249 = vmatpush1.msra.mxu0 0.0
    %250 = vmatprep.subr.mxu0 0.0
    %251 = vmatpush1.msra.mxu0 0.0
    %252 = vmatprep.subr.mxu0 0.0
    %253 = vmatpush1.msra.mxu0 0.0
    %254 = vmatprep.subr.mxu0 0.0
    %255 = vmatpush1.msra.mxu0 0.0
    %256 = vmatprep.subr.mxu0 0.0
    %257 = vmatpush1.msra.mxu0 0.0
    %258 = vmatprep.subr.mxu0 0.0
    %259 = vmatpush1.msra.mxu0 0.0
    %260 = vmatprep.subr.mxu0 0.0
    %261 = vmatpush1.msra.mxu0 0.0
    %262 = vmatprep.subr.mxu0 0.0
    %263 = vmatpush1.msra.mxu0 0.0
    %264 = vmatprep.subr.mxu0 0.0
    %265 = vmatpush1.msra.mxu0 0.0
    %266 = vmatprep.subr.mxu0 0.0
    %267 = vmatpush1.msra.mxu0 0.0
    %268 = vmatprep.subr.mxu0 0.0
    %269 = vmatpush1.msra.mxu0 0.0
    %270 = vmatprep.subr.mxu0 0.0
    %271 = vmatpush1.msra.mxu0 0.0
    %272 = vmatprep.mubr.f32.mxu0 0.0
    %273 = vmatmul.mubr.f32.gmra.mrb[0].mxu0 %v206
    %v274 = vpop.f32.mrb[0].mxu0
    %v275 = vadd.f32 %v122, %v274
    %v276 = vpop.f32.mrb[0].mxu0
    %277 = vdwg.mxu0
    %v278 = vtanh.pop %v275
    %280 = vrot.lane.b32.xlu0 %v278, 64
    %v281 = vpop.permute.xlu0 %280
    %vm283 = vcmask 785920
    %284 = vst.msk [vmem:[#allocation2] sm:$0xff] %vm283, %v281
    %v285 = vld [vmem:[#allocation2] sm:$0xff]
    %v286 = vld [vmem:[%s5] sm:$0xff]
    %v287 = vld [vmem:[%s5 + $0x8] sm:$0xff]
    %v288 = vld [vmem:[%s5 + $0x10] sm:$0xff]
    %v289 = vld [vmem:[%s5 + $0x18] sm:$0xff]
    %v290 = vld [vmem:[%s5 + $0x20] sm:$0xff]
    %v291 = vld [vmem:[%s5 + $0x28] sm:$0xff]
    %v292 = vld [vmem:[%s5 + $0x30] sm:$0xff]
    %v293 = vld [vmem:[%s5 + $0x38] sm:$0xff]
    %v294 = vld [vmem:[%s5 + $0x40] sm:$0xff]
    %v295 = vld [vmem:[%s5 + $0x48] sm:$0xff]
    %v296 = vld [vmem:[%s5 + $0x50] sm:$0xff]
    %v297 = vld [vmem:[%s5 + $0x58] sm:$0xff]
    %v298 = vld [vmem:[%s6] sm:$0x1]
    %v300 = vlaneseq
    %v301 = vshrl.u32 %v300, 7
    %v302 = vsub.s32 0, %v301
    %v303 = vrot.slane %v298, %v302
    %vm305 = vcmask 785408
    %v307 = vsel %vm305, %v285, 0
    %309 = vmatprep.subr.mxu0 0.0
    %310 = vmatpush1.msra.mxu0 %v286
    %311 = vmatprep.subr.mxu0 0.0
    %312 = vmatpush1.msra.mxu0 %v287
    %313 = vmatprep.subr.mxu0 0.0
    %314 = vmatpush1.msra.mxu0 %v288
    %315 = vmatprep.subr.mxu0 0.0
    %316 = vmatpush1.msra.mxu0 %v289
    %317 = vmatprep.subr.mxu0 0.0
    %318 = vmatpush1.msra.mxu0 %v290
    %319 = vmatprep.subr.mxu0 0.0
    %320 = vmatpush1.msra.mxu0 %v291
    %321 = vmatprep.subr.mxu0 0.0
    %322 = vmatpush1.msra.mxu0 %v292
    %323 = vmatprep.subr.mxu0 0.0
    %324 = vmatpush1.msra.mxu0 %v293
    %325 = vmatprep.subr.mxu0 0.0
    %326 = vmatpush1.msra.mxu0 %v294
    %327 = vmatprep.subr.mxu0 0.0
    %328 = vmatpush1.msra.mxu0 %v295
    %329 = vmatprep.subr.mxu0 0.0
    %330 = vmatpush1.msra.mxu0 %v296
    %331 = vmatprep.subr.mxu0 0.0
    %332 = vmatpush1.msra.mxu0 %v297
    %333 = vmatprep.subr.mxu0 0.0
    %334 = vmatpush1.msra.mxu0 0.0
    %335 = vmatprep.subr.mxu0 0.0
    %336 = vmatpush1.msra.mxu0 0.0
    %337 = vmatprep.subr.mxu0 0.0
    %338 = vmatpush1.msra.mxu0 0.0
    %339 = vmatprep.subr.mxu0 0.0
    %340 = vmatpush1.msra.mxu0 0.0
    %341 = vmatprep.subr.mxu0 0.0
    %342 = vmatpush1.msra.mxu0 0.0
    %343 = vmatprep.subr.mxu0 0.0
    %344 = vmatpush1.msra.mxu0 0.0
    %345 = vmatprep.subr.mxu0 0.0
    %346 = vmatpush1.msra.mxu0 0.0
    %347 = vmatprep.subr.mxu0 0.0
    %348 = vmatpush1.msra.mxu0 0.0
    %349 = vmatprep.subr.mxu0 0.0
    %350 = vmatpush1.msra.mxu0 0.0
    %351 = vmatprep.subr.mxu0 0.0
    %352 = vmatpush1.msra.mxu0 0.0
    %353 = vmatprep.subr.mxu0 0.0
    %354 = vmatpush1.msra.mxu0 0.0
    %355 = vmatprep.subr.mxu0 0.0
    %356 = vmatpush1.msra.mxu0 0.0
    %357 = vmatprep.subr.mxu0 0.0
    %358 = vmatpush1.msra.mxu0 0.0
    %359 = vmatprep.subr.mxu0 0.0
    %360 = vmatpush1.msra.mxu0 0.0
    %361 = vmatprep.subr.mxu0 0.0
    %362 = vmatpush1.msra.mxu0 0.0
    %363 = vmatprep.subr.mxu0 0.0
    %364 = vmatpush1.msra.mxu0 0.0
    %365 = vmatprep.subr.mxu0 0.0
    %366 = vmatpush1.msra.mxu0 0.0
    %367 = vmatprep.subr.mxu0 0.0
    %368 = vmatpush1.msra.mxu0 0.0
    %369 = vmatprep.subr.mxu0 0.0
    %370 = vmatpush1.msra.mxu0 0.0
    %371 = vmatprep.subr.mxu0 0.0
    %372 = vmatpush1.msra.mxu0 0.0
    %373 = vmatprep.mubr.f32.mxu0 0.0
    %374 = vmatmul.mubr.f32.gmra.mrb[0].mxu0 %v307
    %v375 = vpop.f32.mrb[0].mxu0
    %v376 = vadd.f32 %v303, %v375
    %v377 = vpop.f32.mrb[0].mxu0
    %378 = vdwg.mxu0
    %379 = vst.msk [vmem:[#allocation3] sm:$0xff] %vm124, %v376
    // Predicated region
    $region30: #{tpu_custom_call.1} parent=1 // pred_check
      _
    $region31: #{tpu_custom_call.1} parent=1 // pred_check_branch
      %381 = sbr.rel (0) target = $region33
    $region32: #{tpu_custom_call.1} parent=1 // pred_region
      %s383 = ssub.s32 128, 128
      %384 = vsyncadd [#allocation4], %s383
      %s386 = sshll.u32 [#allocation3], 4
      %s387 = int_to_ptr.vmem [resolvable:$true] %s386
      %389 = dma.vmem_to_hbm [thread:$0]  %s387, 128, %s7, [#allocation4]
    $region33: #{tpu_custom_call.1} parent=1 // pred_fallthru
      _
    // Predicated region
    $region34: #{tpu_custom_call.1} parent=1 // pred_check
      _
    $region35: #{tpu_custom_call.1} parent=1 // pred_check_branch
      %391 = sbr.rel (0) target = $region37
    $region36: #{tpu_custom_call.1} parent=1 // pred_region
      %392 = dma.done [#allocation4], 128
    $region37: #{tpu_custom_call.1} parent=1 // pred_fallthru
      _
    %393 = vsyncpa [#allocation4], 1

</llo_original>
